<compile_context>
chip_gen: v5e
topology: v5e:2x2
jax: 0.10.0
libtpu: 0.0.40
codegen_flags: <defaults>
</compile_context>

<pallas_src>
import functools

import jax
import jax.numpy as jnp
from jax.experimental import pallas as pl
from jax.experimental.pallas import tpu as pltpu

LANE = 128


def _round_up(x, m):
    return (x + m - 1) // m * m


def _pad2(a, rows, cols):
    return jnp.pad(a, ((0, rows - a.shape[0]), (0, cols - a.shape[1])))


# ----------------------------------------------------------------------------
# Fused Pallas kernel: all GIN layers (tiled over node rows) + mean pool +
# readout Linear, a single pallas_call.
# ----------------------------------------------------------------------------
def fused_gnn_kernel(a_ref, x0_ref, w1_ref, b1_ref, w2_ref, b2_ref,
                     p_ref, lw_ref, lb_ref, o_ref, xbuf):
    """Grid = (layers, Np // tm).

    Per (layer l, row tile i):
        out_rows = relu(MLP((A_hop[l] + I)[rows] @ x_l)) + x_l[rows]
    x is carried across layers in the ping-pong VMEM scratch `xbuf`
    (layer l reads buffer l%2 and writes buffer (l+1)%2).  The mean pool and
    the readout Linear run once, on the very last grid step.
    """
    l = pl.program_id(0)
    i = pl.program_id(1)
    n_layers = pl.num_programs(0)
    n_tiles = pl.num_programs(1)
    tm = a_ref.shape[1]

    cur = l % 2
    nxt = (l + 1) % 2
    row0 = pl.multiple_of(i * tm, tm)

    # Seed the carried node-feature buffer from the embedded inputs (once).
    @pl.when((l == 0) & (i == 0))
    def _():
        xbuf[0] = x0_ref[...]

    x_full = xbuf[cur]                          # [Np, H] f32 (layer-l input)
    x_rows = xbuf[cur, pl.ds(row0, tm), :]      # [tm, H] residual rows

    # GIN aggregation for this row tile on the MXU (bf16 in, f32 accumulate):
    #   agg = (A_hop + (1 + eps) I) @ x,  eps = 0
    agg = jnp.dot(a_ref[0], x_full.astype(jnp.bfloat16),
                  preferred_element_type=jnp.float32)          # [tm, H]

    # 2-layer MLP: hidden -> 2*hidden -> hidden (bf16 weights, f32 acc).
    h = jnp.dot(agg.astype(jnp.bfloat16), w1_ref[0],
                preferred_element_type=jnp.float32) + b1_ref[0]
    h = jnp.maximum(h, 0.0)
    h = jnp.dot(h.astype(jnp.bfloat16), w2_ref[0],
                preferred_element_type=jnp.float32) + b2_ref[0]

    # Residual connection; write into the other ping-pong buffer (x stays f32
    # across layers so bf16 rounding does not compound through the residual).
    xbuf[nxt, pl.ds(row0, tm), :] = jnp.maximum(h, 0.0) + x_rows

    # After the last row tile of the last layer: GlobalPool('mean') + Linear.
    @pl.when((l == n_layers - 1) & (i == n_tiles - 1))
    def _():
        pooled = jnp.dot(p_ref[...], xbuf[nxt],
                         preferred_element_type=jnp.float32)    # [G, H]
        o_ref[...] = (
            jnp.dot(pooled, lw_ref[...], preferred_element_type=jnp.float32)
            + lb_ref[...]
        )


def fused_gnn(a_stack, x0, w1, b1, w2, b2, pool_mat, lin_w, lin_b, *, tm):
    layers = w1.shape[0]
    n_hops = a_stack.shape[0]
    np_, hidden = x0.shape
    g = pool_mat.shape[0]
    tp = lin_w.shape[1]
    assert np_ % tm == 0
    n_tiles = np_ // tm

    def const(shape):
        # whole-array block, resident for the entire grid
        return pl.BlockSpec(shape, lambda l, i: (0,) * len(shape))

    def per_layer(arr):
        return pl.BlockSpec((1,) + arr.shape[1:], lambda l, i: (l, 0, 0))

    # Stream one (tm, Np) row slab of the hop adjacency per grid step; the
    # static layer -> hop map (hop = min(l+1, k)) is folded into the index_map
    # so only the unique hop matrices are stored / DMA'd.
    a_spec = pl.BlockSpec(
        (1, tm, np_), lambda l, i: (jnp.minimum(l, n_hops - 1), i, 0))

    flops_layer = (2 * np_ * np_ * hidden
                   + 2 * np_ * hidden * (2 * hidden)
                   + 2 * np_ * (2 * hidden) * hidden)
    flops = layers * flops_layer + 2 * g * np_ * hidden + 2 * g * hidden * tp
    bytes_accessed = int(
        sum(arr.size * arr.dtype.itemsize
            for arr in (a_stack, x0, w1, b1, w2, b2, pool_mat, lin_w, lin_b))
        + g * tp * 4)

    return pl.pallas_call(
        fused_gnn_kernel,
        out_shape=jax.ShapeDtypeStruct((g, tp), jnp.float32),
        grid=(layers, n_tiles),
        in_specs=[
            a_spec,
            const(x0.shape),
            per_layer(w1),
            per_layer(b1),
            per_layer(w2),
            per_layer(b2),
            const(pool_mat.shape),
            const(lin_w.shape),
            const(lin_b.shape),
        ],
        out_specs=const((g, tp)),
        scratch_shapes=[pltpu.VMEM((2, np_, hidden), jnp.float32)],
        compiler_params=pltpu.CompilerParams(
            # layer axis carries x across iterations; row axis writes into the
            # shared carried scratch -> both must stay "arbitrary".
            dimension_semantics=("arbitrary", "arbitrary"),
            vmem_limit_bytes=64 * 1024 * 1024,
        ),
        cost_estimate=pl.CostEstimate(
            flops=flops, transcendentals=0, bytes_accessed=bytes_accessed),
    )(a_stack, x0, w1, b1, w2, b2, pool_mat, lin_w, lin_b)


# ----------------------------------------------------------------------------
# Model (parameters + forward glue)
# ----------------------------------------------------------------------------
class Config:
    virtual_node = "true"
    k = 3
    methods = "gin"
    hidden = 64
    layers = 3
    dropout = 0.0
    degree = "true"
    appnp = "false"
    pooling = "mean"
    T = 1.0


def init_params(key, config, num_tasks, atom_vocab_sizes, degree_vocab):
    hidden = config.hidden
    layers = config.layers
    params = {}
    ks = jax.random.split(key, 4 + 2 * layers)

    # OGBMolEmbedding: one embedding table per categorical atom feature (+ degree).
    params["atom_emb"] = [
        0.02 * jax.random.normal(ks[i], (v, hidden), jnp.float32)
        for i, v in enumerate(atom_vocab_sizes)
    ]
    params["deg_emb"] = 0.02 * jax.random.normal(
        ks[len(atom_vocab_sizes)], (degree_vocab, hidden), jnp.float32
    )

    # ConvBlocks: GIN 2-layer MLP hidden -> 2*hidden -> hidden
    params["convs"] = []
    for l in range(layers):
        k1, k2 = jax.random.split(ks[4 + l], 2)
        params["convs"].append(
            dict(
                w1=0.05 * jax.random.normal(k1, (hidden, 2 * hidden), jnp.float32),
                b1=jnp.zeros((1, 2 * hidden), jnp.float32),
                w2=0.05 * jax.random.normal(k2, (2 * hidden, hidden), jnp.float32),
                b2=jnp.zeros((1, hidden), jnp.float32),
            )
        )

    # virtual node initial state (zeros, as in the PyTorch module)
    params["v0"] = jnp.zeros((1, hidden), jnp.float32)

    # readout Linear(hidden, num_tasks)
    params["lin_w"] = 0.05 * jax.random.normal(ks[-1], (hidden, num_tasks), jnp.float32)
    params["lin_b"] = jnp.zeros((1, num_tasks), jnp.float32)
    return params


def make_multihop_adjacencies(adj, k, n):
    """adj -> k dense adjacencies: length-t walk reachability + self loops."""
    eye = jnp.eye(n, dtype=jnp.float32)
    adj_bf = adj.astype(jnp.bfloat16)
    hops = []
    reach = adj_bf
    for _ in range(k):
        # GIN aggregation matrix for this hop: A_hop + (1 + eps) * I, eps = 0
        hops.append((reach > 0).astype(jnp.float32) * (1.0 - eye) + eye)
        # bf16 hop-power matmul, f32 accumulation: positive walk counts cannot
        # round to zero, so the `> 0` threshold is preserved.
        reach = jnp.dot(reach, adj_bf,
                        preferred_element_type=jnp.float32).astype(jnp.bfloat16)
    return hops


def net_forward(params, config, atom_feats, degrees, adj, pool_mat, graph_index):
    hidden = config.hidden
    layers = config.layers
    n = atom_feats.shape[0]
    num_tasks = params["lin_w"].shape[1]

    tp = _round_up(num_tasks, LANE)   # readout axis padded to 128 lanes

    # Node axis rounded to 16 (bf16 sublane pack); once the graph is big
    # enough, tile rows by 256 to keep the 256-wide MXU of v6e/v7x full
    # (also a multiple of v5e's 128).
    np_ = _round_up(n, 16)
    if np_ > 256:
        np_ = _round_up(n, 256)
        tm = 256
    else:
        tm = np_

    # ---- OGBMolEmbedding (glue: integer gathers) ----
    x = jnp.zeros((n, hidden), jnp.float32)
    for f, table in enumerate(params["atom_emb"]):
        x = x + jnp.take(table, atom_feats[:, f], axis=0)
    if config.degree == "true":
        x = x + jnp.take(params["deg_emb"], degrees, axis=0)

    # ---- virtual node (v0 is zeros; broadcast per-graph, added to node feats) ----
    if config.virtual_node == "true":
        vnode = jnp.broadcast_to(params["v0"], (pool_mat.shape[0], hidden))
        x = x + jnp.take(vnode, graph_index, axis=0)

    # ---- unique multi-hop adjacencies (dedup: only min(layers, k) matrices) ----
    n_hops = min(layers, config.k)
    hop_adjs = make_multihop_adjacencies(adj, n_hops, n)
    a_stack = jnp.stack(hop_adjs)                                  # [n_hops, n, n]
    a_stack = jnp.pad(a_stack, ((0, 0), (0, np_ - n), (0, np_ - n)))
    a_stack = a_stack.astype(jnp.bfloat16)       # 0/1 entries: exact in bf16

    # ---- pad rows only; feature axis kept at the true hidden width ----
    x_pad = jnp.pad(x, ((0, np_ - n), (0, 0)))
    pool_pad = jnp.pad(pool_mat, ((0, 0), (0, np_ - n)))
    w1 = jnp.stack([cp["w1"] for cp in params["convs"]]).astype(jnp.bfloat16)
    b1 = jnp.stack([cp["b1"] for cp in params["convs"]])           # f32
    w2 = jnp.stack([cp["w2"] for cp in params["convs"]]).astype(jnp.bfloat16)
    b2 = jnp.stack([cp["b2"] for cp in params["convs"]])           # f32
    lin_w = _pad2(params["lin_w"], hidden, tp)
    lin_b = _pad2(params["lin_b"], 1, tp)

    # ---- fused Pallas hot path: all ConvBlocks + mean pool + readout Linear ----
    out_pad = fused_gnn(a_stack, x_pad, w1, b1, w2, b2,
                        pool_pad, lin_w, lin_b, tm=tm)

    # eval mode: no division by config.T
    return out_pad[:, :num_tasks]


# ----------------------------------------------------------------------------
# Main
# ----------------------------------------------------------------------------
if __name__ == "__main__":
    config = Config()
    num_tasks = 8

    G = 2                    # num_graphs (batch)
    nodes_per_graph = 16
    N = G * nodes_per_graph  # 32 nodes total
    atom_vocab_sizes = [16, 8, 8]
    degree_vocab = 16

    key = jax.random.PRNGKey(0)
    k_param, k_feat, k_deg, k_adj = jax.random.split(key, 4)

    params = init_params(k_param, config, num_tasks, atom_vocab_sizes, degree_vocab)

    # deterministic synthetic "molecule batch"
    atom_feats = jnp.stack(
        [
            jax.random.randint(jax.random.fold_in(k_feat, f), (N,), 0, v)
            for f, v in enumerate(atom_vocab_sizes)
        ],
        axis=1,
    )  # [N, num_atom_features] int32

    # random symmetric block-diagonal adjacency (no cross-graph edges, no self loops)
    raw = jax.random.bernoulli(k_adj, 0.25, (N, N)).astype(jnp.float32)
    raw = jnp.maximum(raw, raw.T)
    graph_index = jnp.repeat(jnp.arange(G), nodes_per_graph)          # [N]
    block_mask = (graph_index[:, None] == graph_index[None, :]).astype(jnp.float32)
    adj = raw * block_mask * (1.0 - jnp.eye(N, dtype=jnp.float32))

    degrees = jnp.clip(adj.sum(axis=1).astype(jnp.int32), 0, degree_vocab - 1)  # [N]

    # mean-pool matrix P [G, N]
    pool_mat = (
        (graph_index[None, :] == jnp.arange(G)[:, None]).astype(jnp.float32)
        / nodes_per_graph
    )

    fwd = jax.jit(functools.partial(net_forward, params, config))
    out = fwd(atom_feats, degrees, adj, pool_mat, graph_index)
    jax.block_until_ready(out)
    assert out.shape == (G, num_tasks)
    print("KERNEL_OK")
</pallas_src>

<mosaic_0001>
module attributes {stable_mosaic.version = 11 : i64} {
  func.func @fused_gnn_kernel(%arg0: i32, %arg1: i32, %arg2: memref<1x32x32xbf16, #tpu.memory_space<vmem>>, %arg3: memref<32x64xf32, #tpu.memory_space<vmem>>, %arg4: memref<1x64x128xbf16, #tpu.memory_space<vmem>>, %arg5: memref<1x1x128xf32, #tpu.memory_space<vmem>>, %arg6: memref<1x128x64xbf16, #tpu.memory_space<vmem>>, %arg7: memref<1x1x64xf32, #tpu.memory_space<vmem>>, %arg8: memref<2x32xf32, #tpu.memory_space<vmem>>, %arg9: memref<64x128xf32, #tpu.memory_space<vmem>>, %arg10: memref<1x128xf32, #tpu.memory_space<vmem>>, %arg11: memref<2x128xf32, #tpu.memory_space<vmem>>, %arg12: memref<2x32x64xf32, #tpu.memory_space<vmem>>) attributes {dimension_semantics = [#tpu.dimension_semantics<arbitrary>, #tpu.dimension_semantics<arbitrary>], iteration_bounds = array<i64: 3, 1>, scalar_prefetch = 0 : i64, scratch_operands = 1 : i64, tpu.core_type = #tpu.core_type<tc>, window_params = [{transform_indices = @transform_0, window_bounds = array<i64: 1, 32, 32>}, {pipeline_mode = #tpu.pipeline_mode<synchronous>, transform_indices = @transform_1, window_bounds = array<i64: 32, 64>}, {transform_indices = @transform_2, window_bounds = array<i64: 1, 64, 128>}, {transform_indices = @transform_3, window_bounds = array<i64: 1, 1, 128>}, {transform_indices = @transform_4, window_bounds = array<i64: 1, 128, 64>}, {transform_indices = @transform_5, window_bounds = array<i64: 1, 1, 64>}, {pipeline_mode = #tpu.pipeline_mode<synchronous>, transform_indices = @transform_6, window_bounds = array<i64: 2, 32>}, {pipeline_mode = #tpu.pipeline_mode<synchronous>, transform_indices = @transform_7, window_bounds = array<i64: 64, 128>}, {pipeline_mode = #tpu.pipeline_mode<synchronous>, transform_indices = @transform_8, window_bounds = array<i64: 1, 128>}, {pipeline_mode = #tpu.pipeline_mode<synchronous>, transform_indices = @transform_9, window_bounds = array<i64: 2, 128>}]} {
    %c2_i32 = arith.constant 2 : i32
    %c0_i32 = arith.constant 0 : i32
    %0 = arith.cmpi eq, %c2_i32, %c0_i32 : i32
    %c1_i32 = arith.constant 1 : i32
    %1 = arith.select %0, %c1_i32, %c2_i32 : i32
    %2 = arith.remsi %arg0, %1 : i32
    %c0_i32_0 = arith.constant 0 : i32
    %3 = arith.cmpi ne, %2, %c0_i32_0 : i32
    %c0_i32_1 = arith.constant 0 : i32
    %4 = arith.cmpi slt, %2, %c0_i32_1 : i32
    %c0_i32_2 = arith.constant 0 : i32
    %5 = arith.cmpi slt, %1, %c0_i32_2 : i32
    %6 = arith.xori %4, %5 : i1
    %7 = arith.andi %6, %3 : i1
    %8 = arith.addi %2, %1 : i32
    %9 = arith.select %7, %8, %2 : i32
    %c1_i32_3 = arith.constant 1 : i32
    %10 = arith.addi %arg0, %c1_i32_3 : i32
    %c2_i32_4 = arith.constant 2 : i32
    %c0_i32_5 = arith.constant 0 : i32
    %11 = arith.cmpi eq, %c2_i32_4, %c0_i32_5 : i32
    %c1_i32_6 = arith.constant 1 : i32
    %12 = arith.select %11, %c1_i32_6, %c2_i32_4 : i32
    %13 = arith.remsi %10, %12 : i32
    %c0_i32_7 = arith.constant 0 : i32
    %14 = arith.cmpi ne, %13, %c0_i32_7 : i32
    %c0_i32_8 = arith.constant 0 : i32
    %15 = arith.cmpi slt, %13, %c0_i32_8 : i32
    %c0_i32_9 = arith.constant 0 : i32
    %16 = arith.cmpi slt, %12, %c0_i32_9 : i32
    %17 = arith.xori %15, %16 : i1
    %18 = arith.andi %17, %14 : i1
    %19 = arith.addi %13, %12 : i32
    %20 = arith.select %18, %19, %13 : i32
    %c32_i32 = arith.constant 32 : i32
    %21 = arith.muli %arg1, %c32_i32 : i32
    %22 = tpu.assume_multiple %21, 32 : i32
    %c0_i32_10 = arith.constant 0 : i32
    %23 = arith.cmpi eq, %arg0, %c0_i32_10 : i32
    %c0_i32_11 = arith.constant 0 : i32
    %24 = arith.cmpi eq, %arg1, %c0_i32_11 : i32
    %25 = arith.andi %23, %24 : i1
    %26 = arith.extui %25 : i1 to i32
    %c0_i32_12 = arith.constant 0 : i32
    %27 = arith.cmpi ne, %26, %c0_i32_12 : i32
    scf.if %27 {
      %c0_38 = arith.constant 0 : index
      %c0_39 = arith.constant 0 : index
      %70 = vector.load %arg3[%c0_38, %c0_39] : memref<32x64xf32, #tpu.memory_space<vmem>>, vector<32x64xf32>
      %c0_40 = arith.constant 0 : index
      %c0_41 = arith.constant 0 : index
      %c0_42 = arith.constant 0 : index
      %71 = vector.load %arg12[%c0_40, %c0_41, %c0_42] : memref<2x32x64xf32, #tpu.memory_space<vmem>>, vector<1x32x64xf32>
      %72 = vector.shape_cast %71 : vector<1x32x64xf32> to vector<32x64xf32>
      %73 = vector.shape_cast %70 : vector<32x64xf32> to vector<1x32x64xf32>
      tpu.vector_store %arg12[%c0_40, %c0_41, %c0_42], %73 {strides = array<i32>} : memref<2x32x64xf32, #tpu.memory_space<vmem>>, vector<1x32x64xf32>,
    } else {
    }
    %28 = arith.index_cast %9 : i32 to index
    %c0 = arith.constant 0 : index
    %c0_13 = arith.constant 0 : index
    %29 = vector.load %arg12[%28, %c0, %c0_13] : memref<2x32x64xf32, #tpu.memory_space<vmem>>, vector<1x32x64xf32>
    %30 = vector.shape_cast %29 : vector<1x32x64xf32> to vector<32x64xf32>
    %31 = arith.index_cast %9 : i32 to index
    %32 = arith.index_cast %22 : i32 to index
    %c0_14 = arith.constant 0 : index
    %33 = vector.load %arg12[%31, %32, %c0_14] : memref<2x32x64xf32, #tpu.memory_space<vmem>>, vector<1x32x64xf32>
    %34 = vector.shape_cast %33 : vector<1x32x64xf32> to vector<32x64xf32>
    %c0_15 = arith.constant 0 : index
    %c0_16 = arith.constant 0 : index
    %c0_17 = arith.constant 0 : index
    %35 = vector.load %arg2[%c0_15, %c0_16, %c0_17] : memref<1x32x32xbf16, #tpu.memory_space<vmem>>, vector<1x32x32xbf16>
    %36 = vector.shape_cast %35 : vector<1x32x32xbf16> to vector<32x32xbf16>
    %37 = arith.truncf %30 : vector<32x64xf32> to vector<32x64xbf16>
    %cst = arith.constant dense<0.000000e+00> : vector<32x64xf32>
    %38 = tpu.matmul %36, %37, %cst {dimension_numbers = #tpu.dot_dimension_numbers<[1], [0], [0], [1], [0, 0, 1, 1], [], []>} : vector<32x32xbf16>, vector<32x64xbf16>, vector<32x64xf32> -> vector<32x64xf32>
    %39 = arith.truncf %38 : vector<32x64xf32> to vector<32x64xbf16>
    %c0_18 = arith.constant 0 : index
    %c0_19 = arith.constant 0 : index
    %c0_20 = arith.constant 0 : index
    %40 = vector.load %arg4[%c0_18, %c0_19, %c0_20] : memref<1x64x128xbf16, #tpu.memory_space<vmem>>, vector<1x64x128xbf16>
    %41 = vector.shape_cast %40 : vector<1x64x128xbf16> to vector<64x128xbf16>
    %cst_21 = arith.constant dense<0.000000e+00> : vector<32x128xf32>
    %42 = tpu.matmul %39, %41, %cst_21 {dimension_numbers = #tpu.dot_dimension_numbers<[1], [0], [0], [1], [0, 0, 1, 1], [], []>} : vector<32x64xbf16>, vector<64x128xbf16>, vector<32x128xf32> -> vector<32x128xf32>
    %c0_22 = arith.constant 0 : index
    %c0_23 = arith.constant 0 : index
    %c0_24 = arith.constant 0 : index
    %43 = vector.load %arg5[%c0_22, %c0_23, %c0_24] : memref<1x1x128xf32, #tpu.memory_space<vmem>>, vector<1x1x128xf32>
    %44 = vector.shape_cast %43 : vector<1x1x128xf32> to vector<1x128xf32>
    %45 = vector.broadcast %44 : vector<1x128xf32> to vector<32x128xf32>
    %46 = arith.addf %42, %45 : vector<32x128xf32>
    %cst_25 = arith.constant 0.000000e+00 : f32
    %47 = vector.broadcast %cst_25 : f32 to vector<32x128xf32>
    %48 = arith.maximumf %46, %47 : vector<32x128xf32>
    %49 = arith.truncf %48 : vector<32x128xf32> to vector<32x128xbf16>
    %c0_26 = arith.constant 0 : index
    %c0_27 = arith.constant 0 : index
    %c0_28 = arith.constant 0 : index
    %50 = vector.load %arg6[%c0_26, %c0_27, %c0_28] : memref<1x128x64xbf16, #tpu.memory_space<vmem>>, vector<1x128x64xbf16>
    %51 = vector.shape_cast %50 : vector<1x128x64xbf16> to vector<128x64xbf16>
    %cst_29 = arith.constant dense<0.000000e+00> : vector<32x64xf32>
    %52 = tpu.matmul %49, %51, %cst_29 {dimension_numbers = #tpu.dot_dimension_numbers<[1], [0], [0], [1], [0, 0, 1, 1], [], []>} : vector<32x128xbf16>, vector<128x64xbf16>, vector<32x64xf32> -> vector<32x64xf32>
    %c0_30 = arith.constant 0 : index
    %c0_31 = arith.constant 0 : index
    %c0_32 = arith.constant 0 : index
    %53 = vector.load %arg7[%c0_30, %c0_31, %c0_32] : memref<1x1x64xf32, #tpu.memory_space<vmem>>, vector<1x1x64xf32>
    %54 = vector.shape_cast %53 : vector<1x1x64xf32> to vector<1x64xf32>
    %55 = vector.broadcast %54 : vector<1x64xf32> to vector<32x64xf32>
    %56 = arith.addf %52, %55 : vector<32x64xf32>
    %cst_33 = arith.constant 0.000000e+00 : f32
    %57 = vector.broadcast %cst_33 : f32 to vector<32x64xf32>
    %58 = arith.maximumf %56, %57 : vector<32x64xf32>
    %59 = arith.addf %58, %34 : vector<32x64xf32>
    %60 = arith.index_cast %20 : i32 to index
    %61 = arith.index_cast %22 : i32 to index
    %c0_34 = arith.constant 0 : index
    %62 = vector.load %arg12[%60, %61, %c0_34] : memref<2x32x64xf32, #tpu.memory_space<vmem>>, vector<1x32x64xf32>
    %63 = vector.shape_cast %62 : vector<1x32x64xf32> to vector<32x64xf32>
    %64 = vector.shape_cast %59 : vector<32x64xf32> to vector<1x32x64xf32>
    tpu.vector_store %arg12[%60, %61, %c0_34], %64 {strides = array<i32>} : memref<2x32x64xf32, #tpu.memory_space<vmem>>, vector<1x32x64xf32>,
    %c2_i32_35 = arith.constant 2 : i32
    %65 = arith.cmpi eq, %arg0, %c2_i32_35 : i32
    %c0_i32_36 = arith.constant 0 : i32
    %66 = arith.cmpi eq, %arg1, %c0_i32_36 : i32
    %67 = arith.andi %65, %66 : i1
    %68 = arith.extui %67 : i1 to i32
    %c0_i32_37 = arith.constant 0 : i32
    %69 = arith.cmpi ne, %68, %c0_i32_37 : i32
    scf.if %69 {
      %c0_38 = arith.constant 0 : index
      %c0_39 = arith.constant 0 : index
      %70 = vector.load %arg8[%c0_38, %c0_39] : memref<2x32xf32, #tpu.memory_space<vmem>>, vector<2x32xf32>
      %71 = arith.index_cast %20 : i32 to index
      %c0_40 = arith.constant 0 : index
      %c0_41 = arith.constant 0 : index
      %72 = vector.load %arg12[%71, %c0_40, %c0_41] : memref<2x32x64xf32, #tpu.memory_space<vmem>>, vector<1x32x64xf32>
      %73 = vector.shape_cast %72 : vector<1x32x64xf32> to vector<32x64xf32>
      %cst_42 = arith.constant dense<0.000000e+00> : vector<2x64xf32>
      %74 = tpu.matmul %70, %73, %cst_42 {dimension_numbers = #tpu.dot_dimension_numbers<[1], [0], [0], [1], [0, 0, 1, 1], [], []>} : vector<2x32xf32>, vector<32x64xf32>, vector<2x64xf32> -> vector<2x64xf32>
      %c0_43 = arith.constant 0 : index
      %c0_44 = arith.constant 0 : index
      %75 = vector.load %arg9[%c0_43, %c0_44] : memref<64x128xf32, #tpu.memory_space<vmem>>, vector<64x128xf32>
      %cst_45 = arith.constant dense<0.000000e+00> : vector<2x128xf32>
      %76 = tpu.matmul %74, %75, %cst_45 {dimension_numbers = #tpu.dot_dimension_numbers<[1], [0], [0], [1], [0, 0, 1, 1], [], []>} : vector<2x64xf32>, vector<64x128xf32>, vector<2x128xf32> -> vector<2x128xf32>
      %c0_46 = arith.constant 0 : index
      %c0_47 = arith.constant 0 : index
      %77 = vector.load %arg10[%c0_46, %c0_47] : memref<1x128xf32, #tpu.memory_space<vmem>>, vector<1x128xf32>
      %78 = vector.broadcast %77 : vector<1x128xf32> to vector<2x128xf32>
      %79 = arith.addf %76, %78 : vector<2x128xf32>
      %c0_48 = arith.constant 0 : index
      %c0_49 = arith.constant 0 : index
      %80 = vector.load %arg11[%c0_48, %c0_49] : memref<2x128xf32, #tpu.memory_space<vmem>>, vector<2x128xf32>
      tpu.vector_store %arg11[%c0_48, %c0_49], %79 {strides = array<i32>} : memref<2x128xf32, #tpu.memory_space<vmem>>, vector<2x128xf32>,
    } else {
    }
    return
  }
  func.func @transform_0(%arg0: i32, %arg1: i32) -> (i32, i32, i32) {
    %c2_i32 = arith.constant 2 : i32
    %0 = arith.minsi %arg0, %c2_i32 : i32
    %c0_i32 = arith.constant 0 : i32
    %c0_i32_0 = arith.constant 0 : i32
    return %0, %arg1, %c0_i32 : i32, i32, i32
  }
  func.func @transform_1(%arg0: i32, %arg1: i32) -> (i32, i32) {
    %c0_i32 = arith.constant 0 : i32
    %c0_i32_0 = arith.constant 0 : i32
    %c0_i32_1 = arith.constant 0 : i32
    return %c0_i32, %c0_i32_0 : i32, i32
  }
  func.func @transform_2(%arg0: i32, %arg1: i32) -> (i32, i32, i32) {
    %c0_i32 = arith.constant 0 : i32
    %c0_i32_0 = arith.constant 0 : i32
    %c0_i32_1 = arith.constant 0 : i32
    return %arg0, %c0_i32, %c0_i32_0 : i32, i32, i32
  }
  func.func @transform_3(%arg0: i32, %arg1: i32) -> (i32, i32, i32) {
    %c0_i32 = arith.constant 0 : i32
    %c0_i32_0 = arith.constant 0 : i32
    %c0_i32_1 = arith.constant 0 : i32
    return %arg0, %c0_i32, %c0_i32_0 : i32, i32, i32
  }
  func.func @transform_4(%arg0: i32, %arg1: i32) -> (i32, i32, i32) {
    %c0_i32 = arith.constant 0 : i32
    %c0_i32_0 = arith.constant 0 : i32
    %c0_i32_1 = arith.constant 0 : i32
    return %arg0, %c0_i32, %c0_i32_0 : i32, i32, i32
  }
  func.func @transform_5(%arg0: i32, %arg1: i32) -> (i32, i32, i32) {
    %c0_i32 = arith.constant 0 : i32
    %c0_i32_0 = arith.constant 0 : i32
    %c0_i32_1 = arith.constant 0 : i32
    return %arg0, %c0_i32, %c0_i32_0 : i32, i32, i32
  }
  func.func @transform_6(%arg0: i32, %arg1: i32) -> (i32, i32) {
    %c0_i32 = arith.constant 0 : i32
    %c0_i32_0 = arith.constant 0 : i32
    %c0_i32_1 = arith.constant 0 : i32
    return %c0_i32, %c0_i32_0 : i32, i32
  }
  func.func @transform_7(%arg0: i32, %arg1: i32) -> (i32, i32) {
    %c0_i32 = arith.constant 0 : i32
    %c0_i32_0 = arith.constant 0 : i32
    %c0_i32_1 = arith.constant 0 : i32
    return %c0_i32, %c0_i32_0 : i32, i32
  }
  func.func @transform_8(%arg0: i32, %arg1: i32) -> (i32, i32) {
    %c0_i32 = arith.constant 0 : i32
    %c0_i32_0 = arith.constant 0 : i32
    %c0_i32_1 = arith.constant 0 : i32
    return %c0_i32, %c0_i32_0 : i32, i32
  }
  func.func @transform_9(%arg0: i32, %arg1: i32) -> (i32, i32) {
    %c0_i32 = arith.constant 0 : i32
    %c0_i32_0 = arith.constant 0 : i32
    %c0_i32_1 = arith.constant 0 : i32
    return %c0_i32, %c0_i32_0 : i32, i32
  }
}

</mosaic_0001>

<llo_original>
// kernel: net_forward.1
$region0: #{net_forward.1}
  #allocation0 [shape = 'u32[]', space=smem, size = 0x4, offset = 0x4, fixed_abs, tag = 'smem constant byte address 0x4 - core index']
  #allocation1 [shape = 'u32[72,128]{1,0:T(1,128)}', space=vmem, size = 0x9000, scoped, tag = 'internal scratch']
  #allocation2 [shape = 'f32[2,32,64]{2,1,0:T(8,128)}', space=vmem, size = 0x8000, scoped, tag = 'scratch operand']
  %s0 = inlined_call_operand.vmem [shape: bf16[3,32,32], index: 0, kind: input, shape index: {}]
  %s1 = inlined_call_operand.vmem [shape: f32[32,64], index: 1, kind: input, shape index: {}]
  %s2 = inlined_call_operand.vmem [shape: bf16[3,64,128], index: 2, kind: input, shape index: {}]
  %s3 = inlined_call_operand.vmem [shape: f32[3,1,128], index: 3, kind: input, shape index: {}]
  %s4 = inlined_call_operand.vmem [shape: bf16[3,128,64], index: 4, kind: input, shape index: {}]
  %s5 = inlined_call_operand.vmem [shape: f32[3,1,64], index: 5, kind: input, shape index: {}]
  %s6 = inlined_call_operand.vmem [shape: f32[2,32], index: 6, kind: input, shape index: {}]
  %s7 = inlined_call_operand.vmem [shape: f32[64,128], index: 7, kind: input, shape index: {}]
  %s8 = inlined_call_operand.vmem [shape: f32[1,128], index: 8, kind: input, shape index: {}]
  %s9 = inlined_call_operand.hbm [shape: f32[2,128], index: 9, kind: output, shape index: {}]
  %s10 = sld [smem:[#allocation0]]
  $region77: #{net_forward.1} parent=0
    _
  %s12 = ssub.s32 1, %s10
  %s13 = scalar_select 0, %s12, %s10
  $region1: #{net_forward.1} parent=0
    #allocation3 [shape = 'u8[1024]{0}', space=vmem, size = 0x400, scoped, tag = 'output window, operand 0, single buffered']
    #allocation4 [shape = 's32[2]{0}', space=sflag, size = 0x8, scoped, tag = 'scoped memory for net_forward.1']
    %14 = vsyncpa [#allocation4], 0
    loop: start=0, step=1, limit=5
    $region2: #{net_forward.1} parent=1 // loop_pre_header
      _
    $region3: #{net_forward.1} parent=1 // loop_header
      %s16 = sphi 0, %s20
      %p17 = scmp.ge.s32.totalorder %s16, 5
      %s23 = sphi 0, %s35
      %s24 = sphi 0, %s31
      %s25 = sphi 0, %s23
      %s26 = sphi 0, %s24
      %s27 = sphi 0, %s25
      %s28 = sphi 0, %s26
      %s44 = sphi 0, %s46
      %s47 = sphi 0, %s44
      %s48 = sphi 0, %s47
      %s64 = sphi 0, %s48
      %s68 = sphi 0, %s68
      %s70 = sphi 0, %s68
      %s71 = sphi 0, %s70
      %s85 = sphi 0, %s71
      %s91 = sphi 0, %s93
      %s94 = sphi 0, %s91
      %s95 = sphi 0, %s94
      %s111 = sphi 0, %s95
      %s117 = sphi 0, %s119
      %s120 = sphi 0, %s117
      %s121 = sphi 0, %s120
      %s137 = sphi 0, %s121
      %s143 = sphi 0, %s145
      %s146 = sphi 0, %s143
      %s147 = sphi 0, %s146
      %s163 = sphi 0, %s147
      %s169 = sphi 0, %s171
      %s172 = sphi 0, %s169
      %s173 = sphi 0, %s172
      %s189 = sphi 0, %s173
      %s193 = sphi 0, %s193
      %s195 = sphi 0, %s193
      %s196 = sphi 0, %s195
      %s210 = sphi 0, %s196
      %s214 = sphi 0, %s214
      %s216 = sphi 0, %s214
      %s217 = sphi 0, %s216
      %s231 = sphi 0, %s217
      %s235 = sphi 0, %s235
      %s237 = sphi 0, %s235
      %s238 = sphi 0, %s237
      %s252 = sphi 0, %s238
      %s256 = sphi 0, %s256
      %s258 = sphi 0, %s256
      %s259 = sphi 0, %s258
      %s273 = sphi 0, %s259
    $region4: #{net_forward.1} parent=1 // loop_header_branch
      %19 = sbr.rel (%p17) target = $region8
    $region5: #{net_forward.1} parent=1 // loop_body
      %s21 = ssub.s32 %s16, 1
      %s22 = ssub.s32 %s16, 2
      %s29 = sadd.s32 1, %s24
      %p30 = scmp.ge.s32.totalorder %s29, 1
      %s31 = scalar_select %p30, 0, %s29
      %s32 = sadd.s32 1, %s23
      %s33 = scalar_select %p30, %s32, %s23
      %p34 = scmp.ge.s32.totalorder %s33, 3
      %s35 = scalar_select %p34, 0, %s33
      %p36 = scmp.lt.s32.totalorder %s23, 2
      %s37 = scalar_select %p36, %s23, 2
      %p38 = scmp.lt.s32.totalorder %s35, 2
      %s39 = scalar_select %p38, %s35, 2
      %s40 = ssub.s32 %s37, %s39
      %s41 = ssub.s32 %s24, %s31
      %s42 = sor.u32 %s40, %s41
      %p43 = scmp.eq.s32.totalorder %s42, 0
      %s45 = sadd.s32 %s44, 1
      %s46 = scalar_select %p43, %s44, %s45
      %p49 = pneg %p43
      %p50 = scmp.eq.s32.totalorder %s16, 2
      %p51 = por %p49, %p50
      %p52 = scmp.ne.s32.totalorder %s44, %s47
      %p53 = scmp.eq.s32.totalorder %s16, 0
      %p54 = por %p52, %p53
      %p55 = scmp.ne.s32.totalorder %s44, %s47
      %p56 = scmp.eq.s32.totalorder %s21, 2
      %p57 = por %p55, %p56
      %p58 = scmp.ne.s32.totalorder %s47, %s48
      %p59 = scmp.eq.s32.totalorder %s21, 0
      %p60 = por %p58, %p59
      %p61 = scmp.ne.s32.totalorder %s47, %s48
      %p62 = scmp.eq.s32.totalorder %s22, 2
      %p63 = por %p61, %p62
      %p65 = scmp.ne.s32.totalorder %s48, %s64
      %p66 = scmp.eq.s32.totalorder %s22, 0
      %p67 = por %p65, %p66
      %s69 = sadd.s32 %s68, 1
      %p72 = scmp.eq.s32.totalorder %s16, 2
      %p73 = scmp.ne.s32.totalorder %s68, %s70
      %p74 = scmp.eq.s32.totalorder %s16, 0
      %p75 = por %p73, %p74
      %p76 = scmp.ne.s32.totalorder %s68, %s70
      %p77 = scmp.eq.s32.totalorder %s21, 2
      %p78 = por %p76, %p77
      %p79 = scmp.ne.s32.totalorder %s70, %s71
      %p80 = scmp.eq.s32.totalorder %s21, 0
      %p81 = por %p79, %p80
      %p82 = scmp.ne.s32.totalorder %s70, %s71
      %p83 = scmp.eq.s32.totalorder %s22, 2
      %p84 = por %p82, %p83
      %p86 = scmp.ne.s32.totalorder %s71, %s85
      %p87 = scmp.eq.s32.totalorder %s22, 0
      %p88 = por %p86, %p87
      %s89 = ssub.s32 %s23, %s35
      %p90 = scmp.eq.s32.totalorder %s89, 0
      %s92 = sadd.s32 %s91, 1
      %s93 = scalar_select %p90, %s91, %s92
      %p96 = pneg %p90
      %p97 = scmp.eq.s32.totalorder %s16, 2
      %p98 = por %p96, %p97
      %p99 = scmp.ne.s32.totalorder %s91, %s94
      %p100 = scmp.eq.s32.totalorder %s16, 0
      %p101 = por %p99, %p100
      %p102 = scmp.ne.s32.totalorder %s91, %s94
      %p103 = scmp.eq.s32.totalorder %s21, 2
      %p104 = por %p102, %p103
      %p105 = scmp.ne.s32.totalorder %s94, %s95
      %p106 = scmp.eq.s32.totalorder %s21, 0
      %p107 = por %p105, %p106
      %p108 = scmp.ne.s32.totalorder %s94, %s95
      %p109 = scmp.eq.s32.totalorder %s22, 2
      %p110 = por %p108, %p109
      %p112 = scmp.ne.s32.totalorder %s95, %s111
      %p113 = scmp.eq.s32.totalorder %s22, 0
      %p114 = por %p112, %p113
      %s115 = ssub.s32 %s23, %s35
      %p116 = scmp.eq.s32.totalorder %s115, 0
      %s118 = sadd.s32 %s117, 1
      %s119 = scalar_select %p116, %s117, %s118
      %p122 = pneg %p116
      %p123 = scmp.eq.s32.totalorder %s16, 2
      %p124 = por %p122, %p123
      %p125 = scmp.ne.s32.totalorder %s117, %s120
      %p126 = scmp.eq.s32.totalorder %s16, 0
      %p127 = por %p125, %p126
      %p128 = scmp.ne.s32.totalorder %s117, %s120
      %p129 = scmp.eq.s32.totalorder %s21, 2
      %p130 = por %p128, %p129
      %p131 = scmp.ne.s32.totalorder %s120, %s121
      %p132 = scmp.eq.s32.totalorder %s21, 0
      %p133 = por %p131, %p132
      %p134 = scmp.ne.s32.totalorder %s120, %s121
      %p135 = scmp.eq.s32.totalorder %s22, 2
      %p136 = por %p134, %p135
      %p138 = scmp.ne.s32.totalorder %s121, %s137
      %p139 = scmp.eq.s32.totalorder %s22, 0
      %p140 = por %p138, %p139
      %s141 = ssub.s32 %s23, %s35
      %p142 = scmp.eq.s32.totalorder %s141, 0
      %s144 = sadd.s32 %s143, 1
      %s145 = scalar_select %p142, %s143, %s144
      %p148 = pneg %p142
      %p149 = scmp.eq.s32.totalorder %s16, 2
      %p150 = por %p148, %p149
      %p151 = scmp.ne.s32.totalorder %s143, %s146
      %p152 = scmp.eq.s32.totalorder %s16, 0
      %p153 = por %p151, %p152
      %p154 = scmp.ne.s32.totalorder %s143, %s146
      %p155 = scmp.eq.s32.totalorder %s21, 2
      %p156 = por %p154, %p155
      %p157 = scmp.ne.s32.totalorder %s146, %s147
      %p158 = scmp.eq.s32.totalorder %s21, 0
      %p159 = por %p157, %p158
      %p160 = scmp.ne.s32.totalorder %s146, %s147
      %p161 = scmp.eq.s32.totalorder %s22, 2
      %p162 = por %p160, %p161
      %p164 = scmp.ne.s32.totalorder %s147, %s163
      %p165 = scmp.eq.s32.totalorder %s22, 0
      %p166 = por %p164, %p165
      %s167 = ssub.s32 %s23, %s35
      %p168 = scmp.eq.s32.totalorder %s167, 0
      %s170 = sadd.s32 %s169, 1
      %s171 = scalar_select %p168, %s169, %s170
      %p174 = pneg %p168
      %p175 = scmp.eq.s32.totalorder %s16, 2
      %p176 = por %p174, %p175
      %p177 = scmp.ne.s32.totalorder %s169, %s172
      %p178 = scmp.eq.s32.totalorder %s16, 0
      %p179 = por %p177, %p178
      %p180 = scmp.ne.s32.totalorder %s169, %s172
      %p181 = scmp.eq.s32.totalorder %s21, 2
      %p182 = por %p180, %p181
      %p183 = scmp.ne.s32.totalorder %s172, %s173
      %p184 = scmp.eq.s32.totalorder %s21, 0
      %p185 = por %p183, %p184
      %p186 = scmp.ne.s32.totalorder %s172, %s173
      %p187 = scmp.eq.s32.totalorder %s22, 2
      %p188 = por %p186, %p187
      %p190 = scmp.ne.s32.totalorder %s173, %s189
      %p191 = scmp.eq.s32.totalorder %s22, 0
      %p192 = por %p190, %p191
      %s194 = sadd.s32 %s193, 1
      %p197 = scmp.eq.s32.totalorder %s16, 2
      %p198 = scmp.ne.s32.totalorder %s193, %s195
      %p199 = scmp.eq.s32.totalorder %s16, 0
      %p200 = por %p198, %p199
      %p201 = scmp.ne.s32.totalorder %s193, %s195
      %p202 = scmp.eq.s32.totalorder %s21, 2
      %p203 = por %p201, %p202
      %p204 = scmp.ne.s32.totalorder %s195, %s196
      %p205 = scmp.eq.s32.totalorder %s21, 0
      %p206 = por %p204, %p205
      %p207 = scmp.ne.s32.totalorder %s195, %s196
      %p208 = scmp.eq.s32.totalorder %s22, 2
      %p209 = por %p207, %p208
      %p211 = scmp.ne.s32.totalorder %s196, %s210
      %p212 = scmp.eq.s32.totalorder %s22, 0
      %p213 = por %p211, %p212
      %s215 = sadd.s32 %s214, 1
      %p218 = scmp.eq.s32.totalorder %s16, 2
      %p219 = scmp.ne.s32.totalorder %s214, %s216
      %p220 = scmp.eq.s32.totalorder %s16, 0
      %p221 = por %p219, %p220
      %p222 = scmp.ne.s32.totalorder %s214, %s216
      %p223 = scmp.eq.s32.totalorder %s21, 2
      %p224 = por %p222, %p223
      %p225 = scmp.ne.s32.totalorder %s216, %s217
      %p226 = scmp.eq.s32.totalorder %s21, 0
      %p227 = por %p225, %p226
      %p228 = scmp.ne.s32.totalorder %s216, %s217
      %p229 = scmp.eq.s32.totalorder %s22, 2
      %p230 = por %p228, %p229
      %p232 = scmp.ne.s32.totalorder %s217, %s231
      %p233 = scmp.eq.s32.totalorder %s22, 0
      %p234 = por %p232, %p233
      %s236 = sadd.s32 %s235, 1
      %p239 = scmp.eq.s32.totalorder %s16, 2
      %p240 = scmp.ne.s32.totalorder %s235, %s237
      %p241 = scmp.eq.s32.totalorder %s16, 0
      %p242 = por %p240, %p241
      %p243 = scmp.ne.s32.totalorder %s235, %s237
      %p244 = scmp.eq.s32.totalorder %s21, 2
      %p245 = por %p243, %p244
      %p246 = scmp.ne.s32.totalorder %s237, %s238
      %p247 = scmp.eq.s32.totalorder %s21, 0
      %p248 = por %p246, %p247
      %p249 = scmp.ne.s32.totalorder %s237, %s238
      %p250 = scmp.eq.s32.totalorder %s22, 2
      %p251 = por %p249, %p250
      %p253 = scmp.ne.s32.totalorder %s238, %s252
      %p254 = scmp.eq.s32.totalorder %s22, 0
      %p255 = por %p253, %p254
      %s257 = sadd.s32 %s256, 1
      %p260 = scmp.eq.s32.totalorder %s16, 2
      %p261 = scmp.ne.s32.totalorder %s256, %s258
      %p262 = scmp.eq.s32.totalorder %s16, 0
      %p263 = por %p261, %p262
      %p264 = scmp.ne.s32.totalorder %s256, %s258
      %p265 = scmp.eq.s32.totalorder %s21, 2
      %p266 = por %p264, %p265
      %p267 = scmp.ne.s32.totalorder %s258, %s259
      %p268 = scmp.eq.s32.totalorder %s21, 0
      %p269 = por %p267, %p268
      %p270 = scmp.ne.s32.totalorder %s258, %s259
      %p271 = scmp.eq.s32.totalorder %s22, 2
      %p272 = por %p270, %p271
      %p274 = scmp.ne.s32.totalorder %s259, %s273
      %p275 = scmp.eq.s32.totalorder %s22, 0
      %p276 = por %p274, %p275
      %p277 = scmp.le.s32.totalorder 1, %s16
      %p278 = scmp.lt.s32.totalorder %s16, 4
      %p279 = pnand %p277, %p278
      %p280 = pneg %p279
      // Predicated region
      $region9: #{net_forward.1} parent=5 // pred_check
        _
      $region10: #{net_forward.1} parent=5 // pred_check_branch
        %282 = sbr.rel (%p279) target = $region12
      $region11: #{net_forward.1} parent=5 // pred_region
        %s283 = ssub.s32 %s16, 1
        // Predicated region
        $region13: #{net_forward.1} parent=11 // pred_check
          %p284 = pneg %p81
        $region14: #{net_forward.1} parent=11 // pred_check_branch
          %286 = sbr.rel (%p284) target = $region16
        $region15: #{net_forward.1} parent=11 // pred_region
          _
        $region16: #{net_forward.1} parent=11 // pred_fallthru
          _
        // Predicated region
        $region17: #{net_forward.1} parent=11 // pred_check
          %p287 = pneg %p206
        $region18: #{net_forward.1} parent=11 // pred_check_branch
          %289 = sbr.rel (%p287) target = $region20
        $region19: #{net_forward.1} parent=11 // pred_region
          _
        $region20: #{net_forward.1} parent=11 // pred_fallthru
          _
        // Predicated region
        $region21: #{net_forward.1} parent=11 // pred_check
          %p290 = pneg %p227
        $region22: #{net_forward.1} parent=11 // pred_check_branch
          %292 = sbr.rel (%p290) target = $region24
        $region23: #{net_forward.1} parent=11 // pred_region
          _
        $region24: #{net_forward.1} parent=11 // pred_fallthru
          _
        // Predicated region
        $region25: #{net_forward.1} parent=11 // pred_check
          %p293 = pneg %p248
        $region26: #{net_forward.1} parent=11 // pred_check_branch
          %295 = sbr.rel (%p293) target = $region28
        $region27: #{net_forward.1} parent=11 // pred_region
          _
        $region28: #{net_forward.1} parent=11 // pred_fallthru
          _
      $region12: #{net_forward.1} parent=5 // pred_fallthru
        _
      %p296 = scmp.lt.s32.totalorder %s16, 3
      // Predicated region
      $region29: #{net_forward.1} parent=5 // pred_check
        %p297 = pneg %p296
      $region30: #{net_forward.1} parent=5 // pred_check_branch
        %299 = sbr.rel (%p297) target = $region32
      $region31: #{net_forward.1} parent=5 // pred_region
        // Predicated region
        $region33: #{net_forward.1} parent=31 // pred_check
          %p300 = pneg %p54
        $region34: #{net_forward.1} parent=31 // pred_check_branch
          %302 = sbr.rel (%p300) target = $region36
        $region35: #{net_forward.1} parent=31 // pred_region
          %p303 = scmp.lt.s32.totalorder %s23, 2
          %s304 = scalar_select %p303, %s23, 2
          %s305 = smul.u32 4, %s24
          %p306 = scmp.lt.s32.totalorder %s304, 2
          %s307 = scalar_select %p306, %s304, 2
          %p308 = scmp.lt.s32.totalorder %s305, 3
          %s309 = scalar_select %p308, %s305, 3
          %s310 = smul.addr %s307, 4
          %s311 = sadd.s32 %s309, %s310
          %s312 = smul.addr %s311, 4
          %s313 = scalar_lea.vmem %s0, %s312
          %p314 = scmp.lt.s32.totalorder %s23, 2
          %s315 = scalar_select %p314, %s23, 2
          %s316 = smul.u32 4, %s24
        $region36: #{net_forward.1} parent=31 // pred_fallthru
          _
        // Predicated region
        $region37: #{net_forward.1} parent=31 // pred_check
          %p317 = pneg %p101
        $region38: #{net_forward.1} parent=31 // pred_check_branch
          %319 = sbr.rel (%p317) target = $region40
        $region39: #{net_forward.1} parent=31 // pred_region
          %p320 = scmp.lt.s32.totalorder %s23, 2
          %s321 = scalar_select %p320, %s23, 2
          %s322 = smul.addr %s321, 8
          %s323 = smul.addr %s322, 4
          %s324 = scalar_lea.vmem %s2, %s323
        $region40: #{net_forward.1} parent=31 // pred_fallthru
          _
        // Predicated region
        $region41: #{net_forward.1} parent=31 // pred_check
          %p325 = pneg %p127
        $region42: #{net_forward.1} parent=31 // pred_check_branch
          %327 = sbr.rel (%p325) target = $region44
        $region43: #{net_forward.1} parent=31 // pred_region
          %p328 = scmp.lt.s32.totalorder %s23, 2
          %s329 = scalar_select %p328, %s23, 2
          %s330 = scalar_lea.vmem %s3, %s329
        $region44: #{net_forward.1} parent=31 // pred_fallthru
          _
        // Predicated region
        $region45: #{net_forward.1} parent=31 // pred_check
          %p331 = pneg %p153
        $region46: #{net_forward.1} parent=31 // pred_check_branch
          %333 = sbr.rel (%p331) target = $region48
        $region47: #{net_forward.1} parent=31 // pred_region
          %p334 = scmp.lt.s32.totalorder %s23, 2
          %s335 = scalar_select %p334, %s23, 2
          %s336 = smul.addr %s335, 16
          %s337 = smul.addr %s336, 4
          %s338 = scalar_lea.vmem %s4, %s337
        $region48: #{net_forward.1} parent=31 // pred_fallthru
          _
        // Predicated region
        $region49: #{net_forward.1} parent=31 // pred_check
          %p339 = pneg %p179
        $region50: #{net_forward.1} parent=31 // pred_check_branch
          %341 = sbr.rel (%p339) target = $region52
        $region51: #{net_forward.1} parent=31 // pred_region
          %p342 = scmp.lt.s32.totalorder %s23, 2
          %s343 = scalar_select %p342, %s23, 2
          %s344 = scalar_lea.vmem %s5, %s343
        $region52: #{net_forward.1} parent=31 // pred_fallthru
          _
      $region32: #{net_forward.1} parent=5 // pred_fallthru
        _
      %p345 = scmp.le.s32.totalorder 1, %s16
      %p346 = scmp.lt.s32.totalorder %s16, 4
      %p347 = pnand %p345, %p346
      %p348 = pneg %p347
      // Predicated region
      $region53: #{net_forward.1} parent=5 // pred_check
        _
      $region54: #{net_forward.1} parent=5 // pred_check_branch
        %350 = sbr.rel (%p347) target = $region56
      $region55: #{net_forward.1} parent=5 // pred_region
        %s351 = ssub.s32 %s16, 1
        %p352 = scmp.lt.s32.totalorder %s25, 2
        %s353 = scalar_select %p352, %s25, 2
        %s354 = smul.u32 4, %s26
        %p355 = scmp.lt.s32.totalorder %s353, 2
        %s356 = scalar_select %p355, %s353, 2
        %p357 = scmp.lt.s32.totalorder %s354, 3
        %s358 = scalar_select %p357, %s354, 3
        %s359 = smul.addr %s356, 4
        %s360 = sadd.s32 %s358, %s359
        %s361 = smul.addr %s360, 4
        %s362 = scalar_lea.vmem %s0, %s361
        %p363 = pneg %p60
        %p364 = pneg %p57
        %p365 = pneg %p81
        %p366 = pneg %p78
        %p367 = scmp.lt.s32.totalorder %s25, 2
        %s368 = scalar_select %p367, %s25, 2
        %s369 = smul.addr %s368, 8
        %s370 = smul.addr %s369, 4
        %s371 = scalar_lea.vmem %s2, %s370
        %p372 = pneg %p107
        %p373 = pneg %p104
        %p374 = scmp.lt.s32.totalorder %s25, 2
        %s375 = scalar_select %p374, %s25, 2
        %s376 = scalar_lea.vmem %s3, %s375
        %p377 = pneg %p133
        %p378 = pneg %p130
        %p379 = scmp.lt.s32.totalorder %s25, 2
        %s380 = scalar_select %p379, %s25, 2
        %s381 = smul.addr %s380, 16
        %s382 = smul.addr %s381, 4
        %s383 = scalar_lea.vmem %s4, %s382
        %p384 = pneg %p159
        %p385 = pneg %p156
        %p386 = scmp.lt.s32.totalorder %s25, 2
        %s387 = scalar_select %p386, %s25, 2
        %s388 = scalar_lea.vmem %s5, %s387
        %p389 = pneg %p185
        %p390 = pneg %p182
        %p391 = pneg %p206
        %p392 = pneg %p203
        %p393 = pneg %p227
        %p394 = pneg %p224
        %p395 = pneg %p248
        %p396 = pneg %p245
        %p397 = pneg %p269
        %p398 = pneg %p266
        %p399 = scmp.lt.s32.totalorder %s25, 2
        %s400 = scalar_select %p399, %s25, 2
        %s401 = smul.u32 4, %s26
        %p402 = scmp.lt.s32.totalorder %s400, 2
        %s403 = scalar_select %p402, %s400, 2
        %p404 = scmp.lt.s32.totalorder %s401, 3
        %s405 = scalar_select %p404, %s401, 3
        %s406 = smul.addr %s403, 4
        %s407 = sadd.s32 %s405, %s406
        %s408 = smul.addr %s407, 4
        %s409 = scalar_lea.vmem %s0, %s408
        %p410 = scmp.lt.s32.totalorder %s25, 2
        %s411 = scalar_select %p410, %s25, 2
        %s412 = smul.u32 4, %s26
        %p413 = scmp.lt.s32.totalorder %s25, 2
        %s414 = scalar_select %p413, %s25, 2
        %s415 = smul.addr %s414, 8
        %s416 = smul.addr %s415, 4
        %s417 = scalar_lea.vmem %s2, %s416
        %p418 = scmp.lt.s32.totalorder %s25, 2
        %s419 = scalar_select %p418, %s25, 2
        %s420 = scalar_lea.vmem %s3, %s419
        %p421 = scmp.lt.s32.totalorder %s25, 2
        %s422 = scalar_select %p421, %s25, 2
        %s423 = smul.addr %s422, 16
        %s424 = smul.addr %s423, 4
        %s425 = scalar_lea.vmem %s4, %s424
        %p426 = scmp.lt.s32.totalorder %s25, 2
        %s427 = scalar_select %p426, %s25, 2
        %s428 = scalar_lea.vmem %s5, %s427
        %p430 = scmp.lt.s32.totalorder %s25, 0
        %s431 = ssub.s32 0, %s25
        %s432 = scalar_select %p430, %s431, %s25
        %s433 = sand.u32 %s432, 1
        %s434 = ssub.s32 0, %s433
        %s435 = scalar_select %p430, %s434, %s433
        %p436 = scmp.ne.s32.totalorder %s435, 0
        %p437 = scmp.lt.s32.totalorder %s435, 0
        %p438 = pnand %p437, %p436
        %p439 = pneg %p438
        %s440 = sadd.s32 %s435, 2
        %s441 = scalar_select %p439, %s440, %s435
        %s442 = sadd.s32 %s25, 1
        %p443 = scmp.lt.s32.totalorder %s442, 0
        %s444 = ssub.s32 0, %s442
        %s445 = scalar_select %p443, %s444, %s442
        %s446 = sand.u32 %s445, 1
        %s447 = ssub.s32 0, %s446
        %s448 = scalar_select %p443, %s447, %s446
        %p449 = scmp.ne.s32.totalorder %s448, 0
        %p450 = scmp.lt.s32.totalorder %s448, 0
        %p451 = pnand %p450, %p449
        %p452 = pneg %p451
        %s453 = sadd.s32 %s448, 2
        %s454 = scalar_select %p452, %s453, %s448
        %s455 = smul.u32 %s26, 32
        %p456 = scmp.eq.s32.totalorder %s25, 0
        %p457 = scmp.eq.s32.totalorder %s26, 0
        %p458 = pnand %p456, %p457
        %p459 = pneg %p458
        // Predicated region
        $region57: #{net_forward.1} parent=55 // pred_check
          _
        $region58: #{net_forward.1} parent=55 // pred_check_branch
          %461 = sbr.rel (%p458) target = $region60
        $region59: #{net_forward.1} parent=55 // pred_region
          %v462 = vld [vmem:[%s1] sm:$0xff]
          %v463 = vld [vmem:[%s1 + $0x8] sm:$0xff]
          %v464 = vld [vmem:[%s1 + $0x10] sm:$0xff]
          %v465 = vld [vmem:[%s1 + $0x18] sm:$0xff]
          %vm466 = vcmask 523264
          %467 = vst.msk [vmem:[#allocation2] sm:$0xff] %vm466, %v462
          %468 = vst.msk [vmem:[#allocation2 + $0x8] sm:$0xff] %vm466, %v463
          %469 = vst.msk [vmem:[#allocation2 + $0x10] sm:$0xff] %vm466, %v464
          %470 = vst.msk [vmem:[#allocation2 + $0x18] sm:$0xff] %vm466, %v465
        $region60: #{net_forward.1} parent=55 // pred_fallthru
          _
        %s471 = smul.u32 %s441, 32
        %s472 = scalar_lea.vmem [#allocation2], %s471
        %v473 = vld [vmem:[%s472] sm:$0xff]
        %v474 = vld [vmem:[%s472 + $0x8] sm:$0xff]
        %v475 = vld [vmem:[%s472 + $0x10] sm:$0xff]
        %v476 = vld [vmem:[%s472 + $0x18] sm:$0xff]
        %s477 = sadd.s32 %s455, %s471
        %s478 = scalar_lea.vmem [#allocation2], %s477
        %v479 = vld [vmem:[%s478] sm:$0xff]
        %v480 = vld [vmem:[%s478 + $0x8] sm:$0xff]
        %v481 = vld [vmem:[%s478 + $0x10] sm:$0xff]
        %v482 = vld [vmem:[%s478 + $0x18] sm:$0xff]
        %v483 = vld [vmem:[%s409] sm:$0xf]
        %v484 = vld [vmem:[%s409 + $0x4] sm:$0xf]
        %v485 = vld [vmem:[%s409 + $0x8] sm:$0xf]
        %v486 = vld [vmem:[%s409 + $0xc] sm:$0xf]
        %v487 = vpack.c.bf16 %v474, %v473
        %v488 = vpack.c.bf16 %v476, %v475
        %v493 = vunpack.c.l.b16 %v483
        %v494 = vunpack.c.l.b16 %v484
        %v495 = vunpack.c.l.b16 %v485
        %v496 = vunpack.c.l.b16 %v486
        %v497 = vpack.c.b16 %v494, %v493
        %v498 = vpack.c.b16 %v496, %v495
        %vm499 = vcmask 261120
        %v501 = vsel %vm499, %v497, 0
        %v504 = vsel %vm499, %v498, 0
        %506 = vmatpush.bf16.msra.mxu0 0
        %507 = vmatpush.bf16.msra.mxu0 0
        %508 = vmatpush.bf16.msra.mxu0 0
        %509 = vmatpush.bf16.msra.mxu0 0
        %510 = vmatpush.bf16.msra.mxu0 0
        %511 = vmatpush.bf16.msra.mxu0 0
        %512 = vmatpush.bf16.msra.mxu0 %v488
        %513 = vmatpush.bf16.msra.mxu0 %v487
        %514 = vmatmul.bf16.gmra.mxu0 %v501
        %v515 = vpop.f32.mrf.mxu0
        %v516 = vadd.f32 0.0, %v515
        %v517 = vpop.f32.mrf.mxu0
        %v518 = vadd.f32 0.0, %v517
        %519 = vmatmul.bf16.gmra.mxu0 %v504
        %v520 = vpop.f32.mrf.mxu0
        %v521 = vadd.f32 0.0, %v520
        %v522 = vpop.f32.mrf.mxu0
        %v523 = vadd.f32 0.0, %v522
        %524 = vdwg.mxu0
        %v525 = vpack.c.bf16 %v518, %v516
        %v526 = vpack.c.bf16 %v523, %v521
        %v527 = vld [vmem:[%s417] sm:$0xf]
        %v528 = vld [vmem:[%s417 + $0x4] sm:$0xf]
        %v529 = vld [vmem:[%s417 + $0x8] sm:$0xf]
        %v530 = vld [vmem:[%s417 + $0xc] sm:$0xf]
        %v531 = vld [vmem:[%s417 + $0x10] sm:$0xf]
        %v532 = vld [vmem:[%s417 + $0x14] sm:$0xf]
        %v533 = vld [vmem:[%s417 + $0x18] sm:$0xf]
        %v534 = vld [vmem:[%s417 + $0x1c] sm:$0xf]
        %v535 = vld [vmem:[%s420] sm:$0x1]
        %v537 = vperm.slane %v535, 0
        %v547 = vunpack.c.l.b16 %v527
        %v548 = vunpack.c.l.b16 %v528
        %v549 = vunpack.c.l.b16 %v529
        %v550 = vunpack.c.l.b16 %v530
        %v551 = vunpack.c.l.b16 %v531
        %v552 = vunpack.c.l.b16 %v532
        %v553 = vunpack.c.l.b16 %v533
        %v554 = vunpack.c.l.b16 %v534
        %v555 = vpack.c.b16 %v548, %v547
        %v556 = vpack.c.b16 %v550, %v549
        %v557 = vpack.c.b16 %v552, %v551
        %v558 = vpack.c.b16 %v554, %v553
        %vm563 = vcmask 523264
        %v565 = vsel %vm563, %v525, 0
        %v568 = vsel %vm563, %v526, 0
        %570 = vmatpush.bf16.msra.mxu0 0
        %571 = vmatpush.bf16.msra.mxu0 0
        %572 = vmatpush.bf16.msra.mxu0 0
        %573 = vmatpush.bf16.msra.mxu0 0
        %574 = vmatpush.bf16.msra.mxu0 %v558
        %575 = vmatpush.bf16.msra.mxu0 %v557
        %576 = vmatpush.bf16.msra.mxu0 %v556
        %577 = vmatpush.bf16.msra.mxu0 %v555
        %578 = vmatmul.bf16.gmra.mxu0 %v565
        %v579 = vpop.f32.mrf.mxu0
        %v580 = vadd.f32 %v537, %v579
        %v581 = vpop.f32.mrf.mxu0
        %v582 = vadd.f32 %v537, %v581
        %583 = vmatmul.bf16.gmra.mxu0 %v568
        %v584 = vpop.f32.mrf.mxu0
        %v585 = vadd.f32 %v537, %v584
        %v586 = vpop.f32.mrf.mxu0
        %v587 = vadd.f32 %v537, %v586
        %588 = vdwg.mxu0
        %v589 = vmax.f32 %v580, 0.0
        %v590 = vmax.f32 %v582, 0.0
        %v591 = vmax.f32 %v585, 0.0
        %v592 = vmax.f32 %v587, 0.0
        %v593 = vpack.c.bf16 %v590, %v589
        %v594 = vpack.c.bf16 %v592, %v591
        %v595 = vld [vmem:[%s425] sm:$0xf]
        %v596 = vld [vmem:[%s425 + $0x4] sm:$0xf]
        %v597 = vld [vmem:[%s425 + $0x8] sm:$0xf]
        %v598 = vld [vmem:[%s425 + $0xc] sm:$0xf]
        %v599 = vld [vmem:[%s425 + $0x10] sm:$0xf]
        %v600 = vld [vmem:[%s425 + $0x14] sm:$0xf]
        %v601 = vld [vmem:[%s425 + $0x18] sm:$0xf]
        %v602 = vld [vmem:[%s425 + $0x1c] sm:$0xf]
        %v603 = vld [vmem:[%s425 + $0x20] sm:$0xf]
        %v604 = vld [vmem:[%s425 + $0x24] sm:$0xf]
        %v605 = vld [vmem:[%s425 + $0x28] sm:$0xf]
        %v606 = vld [vmem:[%s425 + $0x2c] sm:$0xf]
        %v607 = vld [vmem:[%s425 + $0x30] sm:$0xf]
        %v608 = vld [vmem:[%s425 + $0x34] sm:$0xf]
        %v609 = vld [vmem:[%s425 + $0x38] sm:$0xf]
        %v610 = vld [vmem:[%s425 + $0x3c] sm:$0xf]
        %v611 = vld [vmem:[%s428] sm:$0x1]
        %v613 = vperm.slane %v611, 0
        %v631 = vunpack.c.l.b16 %v595
        %v632 = vunpack.c.l.b16 %v596
        %v633 = vunpack.c.l.b16 %v597
        %v634 = vunpack.c.l.b16 %v598
        %v635 = vunpack.c.l.b16 %v599
        %v636 = vunpack.c.l.b16 %v600
        %v637 = vunpack.c.l.b16 %v601
        %v638 = vunpack.c.l.b16 %v602
        %v639 = vunpack.c.l.b16 %v603
        %v640 = vunpack.c.l.b16 %v604
        %v641 = vunpack.c.l.b16 %v605
        %v642 = vunpack.c.l.b16 %v606
        %v643 = vunpack.c.l.b16 %v607
        %v644 = vunpack.c.l.b16 %v608
        %v645 = vunpack.c.l.b16 %v609
        %v646 = vunpack.c.l.b16 %v610
        %v647 = vpack.c.b16 %v632, %v631
        %v648 = vpack.c.b16 %v634, %v633
        %v649 = vpack.c.b16 %v636, %v635
        %v650 = vpack.c.b16 %v638, %v637
        %v651 = vpack.c.b16 %v640, %v639
        %v652 = vpack.c.b16 %v642, %v641
        %v653 = vpack.c.b16 %v644, %v643
        %v654 = vpack.c.b16 %v646, %v645
        %663 = vmatpush.bf16.msra.mxu0 %v654
        %664 = vmatpush.bf16.msra.mxu0 %v653
        %665 = vmatpush.bf16.msra.mxu0 %v652
        %666 = vmatpush.bf16.msra.mxu0 %v651
        %667 = vmatpush.bf16.msra.mxu0 %v650
        %668 = vmatpush.bf16.msra.mxu0 %v649
        %669 = vmatpush.bf16.msra.mxu0 %v648
        %670 = vmatpush.bf16.msra.mxu0 %v647
        %671 = vmatmul.bf16.gmra.mxu0 %v593
        %v672 = vpop.f32.mrf.mxu0
        %v673 = vadd.f32 %v613, %v672
        %v674 = vpop.f32.mrf.mxu0
        %v675 = vadd.f32 %v613, %v674
        %676 = vmatmul.bf16.gmra.mxu0 %v594
        %v677 = vpop.f32.mrf.mxu0
        %v678 = vadd.f32 %v613, %v677
        %v679 = vpop.f32.mrf.mxu0
        %v680 = vadd.f32 %v613, %v679
        %681 = vdwg.mxu0
        %v682 = vmax.f32 %v673, 0.0
        %v683 = vmax.f32 %v675, 0.0
        %v684 = vmax.f32 %v678, 0.0
        %v685 = vmax.f32 %v680, 0.0
        %v686 = vadd.f32 %v682, %v479
        %v687 = vadd.f32 %v683, %v480
        %v688 = vadd.f32 %v684, %v481
        %v689 = vadd.f32 %v685, %v482
        %s690 = smul.u32 %s454, 32
        %s691 = sadd.s32 %s455, %s690
        %s692 = scalar_lea.vmem [#allocation2], %s691
        %693 = vst.msk [vmem:[%s692] sm:$0xff] %vm563, %v686
        %694 = vst.msk [vmem:[%s692 + $0x8] sm:$0xff] %vm563, %v687
        %695 = vst.msk [vmem:[%s692 + $0x10] sm:$0xff] %vm563, %v688
        %696 = vst.msk [vmem:[%s692 + $0x18] sm:$0xff] %vm563, %v689
        %p697 = scmp.eq.s32.totalorder %s25, 2
        %p698 = pnand %p697, %p457
        %p699 = pneg %p698
        // Predicated region
        $region61: #{net_forward.1} parent=55 // pred_check
          _
        $region62: #{net_forward.1} parent=55 // pred_check_branch
          %701 = sbr.rel (%p698) target = $region64
        $region63: #{net_forward.1} parent=55 // pred_region
          %v702 = vld [vmem:[%s6] sm:$0x3]
          %s703 = scalar_lea.vmem [#allocation2], %s690
          %v704 = vld [vmem:[%s703] sm:$0xff]
          %v705 = vld [vmem:[%s703 + $0x8] sm:$0xff]
          %v706 = vld [vmem:[%s703 + $0x10] sm:$0xff]
          %v707 = vld [vmem:[%s703 + $0x18] sm:$0xff]
          %v709 = vsel %vm499, %v702, 0
          %711 = vmatpush.msra.mxu0 0.0
          %712 = vmatpush.msra.mxu0 0.0
          %713 = vmatpush.msra.mxu0 0.0
          %714 = vmatpush.msra.mxu0 0.0
          %715 = vmatpush.msra.mxu0 0.0
          %716 = vmatpush.msra.mxu0 0.0
          %717 = vmatpush.msra.mxu0 0.0
          %718 = vmatpush.msra.mxu0 0.0
          %719 = vmatpush.msra.mxu0 0.0
          %720 = vmatpush.msra.mxu0 0.0
          %721 = vmatpush.msra.mxu0 0.0
          %722 = vmatpush.msra.mxu0 0.0
          %723 = vmatpush.msra.mxu0 %v707
          %724 = vmatpush.msra.mxu0 %v706
          %725 = vmatpush.msra.mxu0 %v705
          %726 = vmatpush.msra.mxu0 %v704
          %727 = vmatmul.f32.gmra.mxu0 %v709
          %v728 = vpop.f32.mrf.mxu0
          %v729 = vadd.f32 0.0, %v728
          %730 = vdwg.mxu0
          %v731 = vld [vmem:[%s7] sm:$0xff]
          %v732 = vld [vmem:[%s7 + $0x8] sm:$0xff]
          %v733 = vld [vmem:[%s7 + $0x10] sm:$0xff]
          %v734 = vld [vmem:[%s7 + $0x18] sm:$0xff]
          %v735 = vld [vmem:[%s7 + $0x20] sm:$0xff]
          %v736 = vld [vmem:[%s7 + $0x28] sm:$0xff]
          %v737 = vld [vmem:[%s7 + $0x30] sm:$0xff]
          %v738 = vld [vmem:[%s7 + $0x38] sm:$0xff]
          %v739 = vld [vmem:[%s8] sm:$0x1]
          %v741 = vperm.slane %v739, 0
          %v744 = vsel %vm563, %v729, 0
          %746 = vmatpush.msra.mxu0 0.0
          %747 = vmatpush.msra.mxu0 0.0
          %748 = vmatpush.msra.mxu0 0.0
          %749 = vmatpush.msra.mxu0 0.0
          %750 = vmatpush.msra.mxu0 0.0
          %751 = vmatpush.msra.mxu0 0.0
          %752 = vmatpush.msra.mxu0 0.0
          %753 = vmatpush.msra.mxu0 0.0
          %754 = vmatpush.msra.mxu0 %v738
          %755 = vmatpush.msra.mxu0 %v737
          %756 = vmatpush.msra.mxu0 %v736
          %757 = vmatpush.msra.mxu0 %v735
          %758 = vmatpush.msra.mxu0 %v734
          %759 = vmatpush.msra.mxu0 %v733
          %760 = vmatpush.msra.mxu0 %v732
          %761 = vmatpush.msra.mxu0 %v731
          %762 = vmatmul.f32.gmra.mxu0 %v744
          %v763 = vpop.f32.mrf.mxu0
          %v764 = vadd.f32 %v741, %v763
          %765 = vdwg.mxu0
          %766 = vst [vmem:[#allocation3] sm:$0x3] %v764
        $region64: #{net_forward.1} parent=55 // pred_fallthru
          _
        // Predicated region
        $region65: #{net_forward.1} parent=55 // pred_check
          %p767 = pneg %p266
        $region66: #{net_forward.1} parent=55 // pred_check_branch
          %769 = sbr.rel (%p767) target = $region68
        $region67: #{net_forward.1} parent=55 // pred_region
          %771 = vsyncadd [#allocation4], 0
          %s773 = sshll.u32 [#allocation3], 4
          %s774 = int_to_ptr.vmem [resolvable:$true] %s773
          %s775 = sshll.u32 %s9, 4
          %s776 = int_to_ptr.hbm [resolvable:$true] %s775
          %778 = dma.vmem_to_hbm [thread:$0]  %s774, 32, %s776, [#allocation4]
        $region68: #{net_forward.1} parent=55 // pred_fallthru
          _
        // Predicated region
        $region69: #{net_forward.1} parent=55 // pred_check
          %p779 = pneg %p266
        $region70: #{net_forward.1} parent=55 // pred_check_branch
          %781 = sbr.rel (%p779) target = $region72
        $region71: #{net_forward.1} parent=55 // pred_region
          %783 = dma.done [#allocation4], 32
        $region72: #{net_forward.1} parent=55 // pred_fallthru
          _
      $region56: #{net_forward.1} parent=5 // pred_fallthru
        _
      %p784 = scmp.le.s32.totalorder 2, %s16
      // Predicated region
      $region73: #{net_forward.1} parent=5 // pred_check
        %p785 = pneg %p784
      $region74: #{net_forward.1} parent=5 // pred_check_branch
        %787 = sbr.rel (%p785) target = $region76
      $region75: #{net_forward.1} parent=5 // pred_region
        %s788 = ssub.s32 %s16, 2
      $region76: #{net_forward.1} parent=5 // pred_fallthru
        _
    $region6: #{net_forward.1} parent=1 // loop_footer
      %s20 = sadd.s32 1, %s16
    $region7: #{net_forward.1} parent=1 // loop_footer_branch
      %15 = sbr.rel target = $region3
    $region8: #{net_forward.1} parent=1 // loop_exit
      _
    %789 = vsyncpa [#allocation4], 1
    %s790 = scalar_lea.sflag [#allocation4], 1
    %791 = vsyncpa %s790, 1

</llo_original>
